<compile_context>
chip_gen: v5e
topology: v5e:2x2
jax: 0.10.0
libtpu: 0.0.40
codegen_flags: <defaults>
</compile_context>

<pallas_src>
import re

import numpy as np
import jax
import jax.numpy as jnp
from jax import lax
from jax.experimental import pallas as pl
from jax.experimental.pallas import tpu as pltpu

_LANE = 128
_TILE_TARGET_BYTES = 16 << 20  # ~16 MiB per x tile => DMA time dominates per-step overhead


def _round_down(x, m):
    return (x // m) * m


def _round_up(x, m):
    return ((x + m - 1) // m) * m


def _tpu_generation():
    try:
        kind = jax.devices()[0].device_kind.lower()
    except Exception:
        return 0
    m = re.search(r"(\d+)", kind)
    return int(m.group(1)) if m else 0


def _num_tensorcores():
    # v7x has 2 TensorCores per chip; v4/v5e/v6e expose 1 per Pallas kernel.
    return 2 if _tpu_generation() >= 7 else 1


def _vmem_limit_bytes():
    cap = None
    try:
        cap = getattr(pltpu.get_tpu_info(), "vmem_capacity_bytes", None)
    except Exception:
        cap = None
    if not cap:
        gen = _tpu_generation()
        cap = (128 << 20) if gen in (4, 5, 6) else (64 << 20)  # unknown -> conservative
    return int(min(100 << 20, max(32 << 20, (cap * 3) // 4)))


def _choose_tiles(B, D, vmem_limit, num_cores):
    """Pick (tb, tk, nk, w_resident) from an explicit VMEM budget."""
    its = 4  # f32
    budget = int(vmem_limit * 0.78)  # leave headroom for compiler-internal scratch
    headroom = 2 << 20

    # ---- tk: prefer fully contiguous rows (tk = D) whenever two >=128-row
    # x buffers plus the resident weight fit the budget. ----
    w_full = 2 * 8 * _round_up(D, _LANE) * its  # (1, D) resident weight, (8,128)-padded, dbl-buf
    if 2 * _LANE * D * its <= budget - w_full - headroom:
        tk, nk = D, 1
        w_bytes = w_full
    else:
        per_tile = max(4 << 20, min(_TILE_TARGET_BYTES, (budget - headroom) // 2))
        tk = _round_down(per_tile // (_LANE * its), _LANE)
        tk = max(1024, min(tk, _round_down(D, _LANE)))  # >=1024 cols per row segment
        nk = pl.cdiv(D, tk)
        w_bytes = 2 * _round_up(nk, 8) * _round_up(tk, _LANE) * its

    # Resident weight only if it stays a small fraction of the budget.
    w_resident = (nk == 1) or (w_bytes <= budget // 4)
    if not w_resident:
        w_bytes = 2 * 8 * _round_up(tk, _LANE) * its  # streamed (1, tk) chunk, dbl-buffered

    # ---- tb: biggest multiple of 128 whose double-buffered x tile fits,
    # targeting ~16 MiB tiles (per-step DMA >> 0.35 us fixed overhead). ----
    x_per_buf = max(2 << 20, (budget - w_bytes - headroom) // 2)
    tile_bytes = min(_TILE_TARGET_BYTES, x_per_buf)
    tb = min(_round_down(B, _LANE), max(_LANE, _round_down(tile_bytes // (tk * its), _LANE)))
    tb = max(tb, _LANE)

    # ---- v7x only: shard the (parallel) batch axis evenly over both cores. ----
    if num_cores == 2 and B >= 2 * _LANE:
        nb = pl.cdiv(B, tb)
        if nb == 1:
            tb = max(_LANE, _round_down(pl.cdiv(B, 2), _LANE))
        elif nb % 2 == 1:
            tb2 = max(_LANE, _round_down(pl.cdiv(B, nb + 1), _LANE))
            if pl.cdiv(B, tb2) % 2 == 0:
                tb = tb2
    return tb, tk, nk, w_resident


def _make_kernel(D, tb, tk, nk, w_resident):
    rem = D % tk if nk > 1 else 0  # static

    def kernel(x_ref, w_ref, b_ref, o_ref):
        # x_ref: (tb, tk) streamed x tile
        # w_ref: (nk, tk) resident weight (or (1, tk) streamed chunk)
        # b_ref: (1,) SMEM bias
        # o_ref: (1, 1, tb) lane-dense f32 output row, revisited across K
        k = pl.program_id(1)

        xv = x_ref[...]
        if rem:
            # Tail-K block: zero columns >= D so garbage in the partial DMA
            # (possibly non-finite) contributes nothing to any row's dot.
            col = lax.broadcasted_iota(jnp.int32, (tb, tk), 1)
            xv = jnp.where(k * tk + col < D, xv, jnp.zeros_like(xv))

        if w_resident and nk > 1:
            wv = w_ref[pl.ds(k, 1), :]     # (1, tk) chunk of the resident weight
        else:
            wv = w_ref[...]                # (1, tk)

        # (1, tk) . (tb, tk) contracting tk -> (1, tb): result is lane-dense.
        part = lax.dot_general(
            wv, xv,
            dimension_numbers=(((1,), (1,)), ((), ())),
            preferred_element_type=jnp.float32,
        )

        if nk == 1:
            o_ref[0] = part + b_ref[0]
        else:
            @pl.when(k == 0)
            def _first():
                o_ref[0] = part + b_ref[0]

            @pl.when(k > 0)
            def _acc():
                o_ref[0] = o_ref[0] + part

    return kernel


def fast_linear(x, weight, bias, *, tiles=None):
    """y = x @ weight.T + bias  (torch nn.Linear(input_dim, 1) forward)."""
    assert x.ndim == 2
    B, D = x.shape
    assert weight.shape == (1, D)
    assert bias.shape == (1,)

    if B < _LANE:
        # Tiny batch: a single sub-128-lane grid step is pure launch overhead
        # plus masked partial-lane stores; XLA's GEMV is already at roofline.
        return x @ weight.T + bias

    vmem_limit = _vmem_limit_bytes()
    if tiles is None:
        tb, tk, nk, w_resident = _choose_tiles(B, D, vmem_limit, _num_tensorcores())
    else:
        tb, tk = tiles
        nk = pl.cdiv(D, tk)
        w_resident = (nk == 1) or (
            2 * _round_up(nk, 8) * _round_up(tk, _LANE) * 4 <= int(vmem_limit * 0.78) // 4)
    nb = pl.cdiv(B, tb)

    # Weight laid out as one row per K chunk; tail chunk zero-padded so all
    # in-kernel weight accesses stay in bounds (tiny one-time pad, D*4 bytes).
    d_pad = nk * tk
    w = weight if d_pad == D else jnp.pad(weight, ((0, 0), (0, d_pad - D)))
    w = w.reshape(nk, tk)

    if w_resident:
        w_spec = pl.BlockSpec((nk, tk), lambda i, k: (0, 0))   # DMA'd once, stays resident
    else:
        w_spec = pl.BlockSpec((1, tk), lambda i, k: (k, 0))    # fallback: streamed per K step

    out = pl.pallas_call(
        _make_kernel(D, tb, tk, nk, w_resident),
        out_shape=jax.ShapeDtypeStruct((nb, 1, tb), jnp.float32),
        grid_spec=pltpu.PrefetchScalarGridSpec(
            num_scalar_prefetch=0,
            grid=(nb, nk),                                         # reduction (K) axis last
            in_specs=[
                pl.BlockSpec((tb, tk), lambda i, k: (i, k)),       # streamed x tile
                w_spec,                                            # weight
                pl.BlockSpec(memory_space=pltpu.MemorySpace.SMEM), # bias scalar
            ],
            out_specs=pl.BlockSpec((1, 1, tb), lambda i, k: (i, 0, 0)),
        ),
        compiler_params=pltpu.CompilerParams(
            dimension_semantics=("parallel", "arbitrary"),
            vmem_limit_bytes=vmem_limit,
        ),
        cost_estimate=pl.CostEstimate(
            flops=2 * B * D, transcendentals=0, bytes_accessed=(B * D + D + B) * 4),
    )(x, w, bias)

    # (nb, 1, tb) -> batch order; lanes past B came from the partial last batch
    # block (each output lane depends only on its own x row, so any garbage in
    # those padded lanes is sliced off here and never mixes into valid lanes).
    return out.reshape(nb * tb)[:B].reshape(B, 1)


if __name__ == "__main__":
    key = jax.random.PRNGKey(0)
    kx1, kx2, kw, kb = jax.random.split(key, 4)

    # Case 1: single-K-block path (tk == D), lane-dense output.
    B1, D1 = 256, 96
    bound1 = 1.0 / (D1 ** 0.5)
    w1 = jax.random.uniform(kw, (1, D1), jnp.float32, -bound1, bound1)  # torch layout
    b1 = jax.random.uniform(kb, (1,), jnp.float32, -bound1, bound1)
    x1 = jax.random.normal(kx1, (B1, D1), jnp.float32)
    y1 = jax.block_until_ready(fast_linear(x1, w1, b1))
    ref1 = np.asarray(x1, np.float64) @ np.asarray(w1, np.float64).T + np.asarray(b1, np.float64)
    assert y1.shape == (B1, 1)
    assert np.max(np.abs(np.asarray(y1, np.float64) - ref1)) < 5e-3

    # Case 2: force the K-split path (resident weight chunks + masked tail-K).
    B2, D2 = 256, 200
    bound2 = 1.0 / (D2 ** 0.5)
    w2 = jax.random.uniform(kw, (1, D2), jnp.float32, -bound2, bound2)
    b2 = jax.random.uniform(kb, (1,), jnp.float32, -bound2, bound2)
    x2 = jax.random.normal(kx2, (B2, D2), jnp.float32)
    y2 = jax.block_until_ready(fast_linear(x2, w2, b2, tiles=(128, 128)))
    ref2 = np.asarray(x2, np.float64) @ np.asarray(w2, np.float64).T + np.asarray(b2, np.float64)
    assert y2.shape == (B2, 1)
    assert np.max(np.abs(np.asarray(y2, np.float64) - ref2)) < 5e-3

    print("KERNEL_OK")
</pallas_src>

<mosaic_0001>
module attributes {stable_mosaic.version = 11 : i64} {
  func.func @kernel(%arg0: i32, %arg1: i32, %arg2: memref<256x96xf32, #tpu.memory_space<vmem>>, %arg3: memref<1x96xf32, #tpu.memory_space<vmem>>, %arg4: memref<1xf32, #tpu.memory_space<smem>>, %arg5: memref<1x1x256xf32, #tpu.memory_space<vmem>>) attributes {dimension_semantics = [#tpu.dimension_semantics<parallel>, #tpu.dimension_semantics<arbitrary>], iteration_bounds = array<i64: 1, 1>, scalar_prefetch = 0 : i64, scratch_operands = 0 : i64, tpu.core_type = #tpu.core_type<tc>, window_params = [{transform_indices = @transform_0, window_bounds = array<i64: 256, 96>}, {pipeline_mode = #tpu.pipeline_mode<synchronous>, transform_indices = @transform_1, window_bounds = array<i64: 1, 96>}, {transform_indices = @transform_2, window_bounds = array<i64: 1>}, {transform_indices = @transform_3, window_bounds = array<i64: 1, 1, 256>}]} {
    %c0 = arith.constant 0 : index
    %c0_0 = arith.constant 0 : index
    %0 = vector.load %arg2[%c0, %c0_0] : memref<256x96xf32, #tpu.memory_space<vmem>>, vector<256x96xf32>
    %c0_1 = arith.constant 0 : index
    %c0_2 = arith.constant 0 : index
    %1 = vector.load %arg3[%c0_1, %c0_2] : memref<1x96xf32, #tpu.memory_space<vmem>>, vector<1x96xf32>
    %cst = arith.constant dense<0.000000e+00> : vector<1x256xf32>
    %2 = tpu.matmul %1, %0, %cst {dimension_numbers = #tpu.dot_dimension_numbers<[1], [1], [0], [0], [0, 0, 1, 0], [], []>} : vector<1x96xf32>, vector<256x96xf32>, vector<1x256xf32> -> vector<1x256xf32>
    %c0_3 = arith.constant 0 : index
    %3 = memref.load %arg4[%c0_3] : memref<1xf32, #tpu.memory_space<smem>>
    %4 = vector.broadcast %3 : f32 to vector<1x256xf32>
    %5 = arith.addf %2, %4 : vector<1x256xf32>
    %c0_4 = arith.constant 0 : index
    %c0_5 = arith.constant 0 : index
    %c0_6 = arith.constant 0 : index
    %6 = vector.load %arg5[%c0_4, %c0_5, %c0_6] : memref<1x1x256xf32, #tpu.memory_space<vmem>>, vector<1x1x256xf32>
    %7 = vector.shape_cast %6 : vector<1x1x256xf32> to vector<1x256xf32>
    %8 = vector.shape_cast %5 : vector<1x256xf32> to vector<1x1x256xf32>
    tpu.vector_store %arg5[%c0_4, %c0_5, %c0_6], %8 {strides = array<i32>} : memref<1x1x256xf32, #tpu.memory_space<vmem>>, vector<1x1x256xf32>,
    return
  }
  func.func @transform_0(%arg0: i32, %arg1: i32) -> (i32, i32) {
    %c0_i32 = arith.constant 0 : i32
    return %arg0, %arg1 : i32, i32
  }
  func.func @transform_1(%arg0: i32, %arg1: i32) -> (i32, i32) {
    %c0_i32 = arith.constant 0 : i32
    %c0_i32_0 = arith.constant 0 : i32
    %c0_i32_1 = arith.constant 0 : i32
    return %c0_i32, %c0_i32_0 : i32, i32
  }
  func.func @transform_2(%arg0: i32, %arg1: i32) -> i32 {
    %c0_i32 = arith.constant 0 : i32
    %c0_i32_0 = arith.constant 0 : i32
    return %c0_i32 : i32
  }
  func.func @transform_3(%arg0: i32, %arg1: i32) -> (i32, i32, i32) {
    %c0_i32 = arith.constant 0 : i32
    %c0_i32_0 = arith.constant 0 : i32
    %c0_i32_1 = arith.constant 0 : i32
    return %arg0, %c0_i32, %c0_i32_0 : i32, i32, i32
  }
}

</mosaic_0001>

<llo_original>
// kernel: tpu_custom_call.1
$region0: #{tpu_custom_call.1}
  #allocation0 [shape = 'u32[]', space=smem, size = 0x4, offset = 0x4, fixed_abs, tag = 'smem constant byte address 0x4 - core index']
  #allocation1 [shape = 'u32[72,128]{1,0:T(1,128)}', space=vmem, size = 0x9000, scoped, tag = 'internal scratch']
  #allocation2 [shape = 'f32[1]{0:T(128)S(6)}', space=smem, size = 0x200, scoped, tag = 'scoped memory for tpu_custom_call.1']
  %s0 = inlined_call_operand.vmem [shape: f32[256,96], index: 0, kind: input, shape index: {}]
  %s1 = inlined_call_operand.vmem [shape: f32[1,96], index: 1, kind: input, shape index: {}]
  %s2 = inlined_call_operand.<no memory space> [shape: f32[1], index: 2, kind: input, shape index: {}]
  %s3 = inlined_call_operand.hbm [shape: f32[1,1,256], index: 3, kind: output, shape index: {}]
  %s4 = sld [smem:[#allocation0]]
  $region22: #{tpu_custom_call.1} parent=0
    _
  %s6 = ssub.s32 1, %s4
  %s7 = scalar_select 0, %s6, %s4
  %8 = sst [smem:[#allocation2]] %s2
  $region1: #{tpu_custom_call.1} parent=0
    #allocation3 [shape = 'u8[1024]{0}', space=vmem, size = 0x400, scoped, tag = 'output window, operand 0, single buffered']
    #allocation4 [shape = 's32[1]{0}', space=sflag, size = 0x4, scoped, tag = 'scoped memory for tpu_custom_call.1']
    %9 = vsyncpa [#allocation4], 0
    // Predicated region
    $region2: #{tpu_custom_call.1} parent=1 // pred_check
      _
    $region3: #{tpu_custom_call.1} parent=1 // pred_check_branch
      %11 = sbr.rel (0) target = $region5
    $region4: #{tpu_custom_call.1} parent=1 // pred_region
      _
    $region5: #{tpu_custom_call.1} parent=1 // pred_fallthru
      _
    // Predicated region
    $region6: #{tpu_custom_call.1} parent=1 // pred_check
      _
    $region7: #{tpu_custom_call.1} parent=1 // pred_check_branch
      %13 = sbr.rel (0) target = $region9
    $region8: #{tpu_custom_call.1} parent=1 // pred_region
      _
    $region9: #{tpu_custom_call.1} parent=1 // pred_fallthru
      _
    // Predicated region
    $region10: #{tpu_custom_call.1} parent=1 // pred_check
      _
    $region11: #{tpu_custom_call.1} parent=1 // pred_check_branch
      %15 = sbr.rel (0) target = $region13
    $region12: #{tpu_custom_call.1} parent=1 // pred_region
      _
    $region13: #{tpu_custom_call.1} parent=1 // pred_fallthru
      _
    %v16 = vld [vmem:[%s0] sm:$0xff]
    %v17 = vld [vmem:[%s0 + $0x8] sm:$0xff]
    %v18 = vld [vmem:[%s0 + $0x10] sm:$0xff]
    %v19 = vld [vmem:[%s0 + $0x18] sm:$0xff]
    %v20 = vld [vmem:[%s0 + $0x20] sm:$0xff]
    %v21 = vld [vmem:[%s0 + $0x28] sm:$0xff]
    %v22 = vld [vmem:[%s0 + $0x30] sm:$0xff]
    %v23 = vld [vmem:[%s0 + $0x38] sm:$0xff]
    %v24 = vld [vmem:[%s0 + $0x40] sm:$0xff]
    %v25 = vld [vmem:[%s0 + $0x48] sm:$0xff]
    %v26 = vld [vmem:[%s0 + $0x50] sm:$0xff]
    %v27 = vld [vmem:[%s0 + $0x58] sm:$0xff]
    %v28 = vld [vmem:[%s0 + $0x60] sm:$0xff]
    %v29 = vld [vmem:[%s0 + $0x68] sm:$0xff]
    %v30 = vld [vmem:[%s0 + $0x70] sm:$0xff]
    %v31 = vld [vmem:[%s0 + $0x78] sm:$0xff]
    %v32 = vld [vmem:[%s0 + $0x80] sm:$0xff]
    %v33 = vld [vmem:[%s0 + $0x88] sm:$0xff]
    %v34 = vld [vmem:[%s0 + $0x90] sm:$0xff]
    %v35 = vld [vmem:[%s0 + $0x98] sm:$0xff]
    %v36 = vld [vmem:[%s0 + $0xa0] sm:$0xff]
    %v37 = vld [vmem:[%s0 + $0xa8] sm:$0xff]
    %v38 = vld [vmem:[%s0 + $0xb0] sm:$0xff]
    %v39 = vld [vmem:[%s0 + $0xb8] sm:$0xff]
    %v40 = vld [vmem:[%s0 + $0xc0] sm:$0xff]
    %v41 = vld [vmem:[%s0 + $0xc8] sm:$0xff]
    %v42 = vld [vmem:[%s0 + $0xd0] sm:$0xff]
    %v43 = vld [vmem:[%s0 + $0xd8] sm:$0xff]
    %v44 = vld [vmem:[%s0 + $0xe0] sm:$0xff]
    %v45 = vld [vmem:[%s0 + $0xe8] sm:$0xff]
    %v46 = vld [vmem:[%s0 + $0xf0] sm:$0xff]
    %v47 = vld [vmem:[%s0 + $0xf8] sm:$0xff]
    %v48 = vld [vmem:[%s1] sm:$0x1]
    %s49 = sld [smem:[#allocation2]]
    %v50 = vstv %s49
    %vm51 = vcmask 785408
    %v53 = vsel %vm51, %v48, 0
    %v56 = vsel %vm51, %v16, 0
    %v59 = vsel %vm51, %v17, 0
    %v62 = vsel %vm51, %v18, 0
    %v65 = vsel %vm51, %v19, 0
    %v68 = vsel %vm51, %v20, 0
    %v71 = vsel %vm51, %v21, 0
    %v74 = vsel %vm51, %v22, 0
    %v77 = vsel %vm51, %v23, 0
    %v80 = vsel %vm51, %v24, 0
    %v83 = vsel %vm51, %v25, 0
    %v86 = vsel %vm51, %v26, 0
    %v89 = vsel %vm51, %v27, 0
    %v92 = vsel %vm51, %v28, 0
    %v95 = vsel %vm51, %v29, 0
    %v98 = vsel %vm51, %v30, 0
    %v101 = vsel %vm51, %v31, 0
    %v104 = vsel %vm51, %v32, 0
    %v107 = vsel %vm51, %v33, 0
    %v110 = vsel %vm51, %v34, 0
    %v113 = vsel %vm51, %v35, 0
    %v116 = vsel %vm51, %v36, 0
    %v119 = vsel %vm51, %v37, 0
    %v122 = vsel %vm51, %v38, 0
    %v125 = vsel %vm51, %v39, 0
    %v128 = vsel %vm51, %v40, 0
    %v131 = vsel %vm51, %v41, 0
    %v134 = vsel %vm51, %v42, 0
    %v137 = vsel %vm51, %v43, 0
    %v140 = vsel %vm51, %v44, 0
    %v143 = vsel %vm51, %v45, 0
    %v146 = vsel %vm51, %v46, 0
    %v149 = vsel %vm51, %v47, 0
    %151 = vmatpush.xpose.msra.mxu0 %v101
    %152 = vmatpush.xpose.msra.mxu0 %v98
    %153 = vmatpush.xpose.msra.mxu0 %v95
    %154 = vmatpush.xpose.msra.mxu0 %v92
    %155 = vmatpush.xpose.msra.mxu0 %v89
    %156 = vmatpush.xpose.msra.mxu0 %v86
    %157 = vmatpush.xpose.msra.mxu0 %v83
    %158 = vmatpush.xpose.msra.mxu0 %v80
    %159 = vmatpush.xpose.msra.mxu0 %v77
    %160 = vmatpush.xpose.msra.mxu0 %v74
    %161 = vmatpush.xpose.msra.mxu0 %v71
    %162 = vmatpush.xpose.msra.mxu0 %v68
    %163 = vmatpush.xpose.msra.mxu0 %v65
    %164 = vmatpush.xpose.msra.mxu0 %v62
    %165 = vmatpush.xpose.msra.mxu0 %v59
    %166 = vmatpush.xpose.msra.mxu0 %v56
    %167 = vmatmul.f32.gmra.mxu0 %v53
    %v168 = vpop.f32.mrf.mxu0
    %v169 = vadd.f32 %v50, %v168
    %170 = vdwg.mxu0
    %171 = vmatpush.xpose.msra.mxu0 %v149
    %172 = vmatpush.xpose.msra.mxu0 %v146
    %173 = vmatpush.xpose.msra.mxu0 %v143
    %174 = vmatpush.xpose.msra.mxu0 %v140
    %175 = vmatpush.xpose.msra.mxu0 %v137
    %176 = vmatpush.xpose.msra.mxu0 %v134
    %177 = vmatpush.xpose.msra.mxu0 %v131
    %178 = vmatpush.xpose.msra.mxu0 %v128
    %179 = vmatpush.xpose.msra.mxu0 %v125
    %180 = vmatpush.xpose.msra.mxu0 %v122
    %181 = vmatpush.xpose.msra.mxu0 %v119
    %182 = vmatpush.xpose.msra.mxu0 %v116
    %183 = vmatpush.xpose.msra.mxu0 %v113
    %184 = vmatpush.xpose.msra.mxu0 %v110
    %185 = vmatpush.xpose.msra.mxu0 %v107
    %186 = vmatpush.xpose.msra.mxu0 %v104
    %187 = vmatmul.f32.gmra.mxu0 %v53
    %v188 = vpop.f32.mrf.mxu0
    %v189 = vadd.f32 %v50, %v188
    %190 = vdwg.mxu0
    %v193 = vrot.slane %v189, 7
    %vm194 = vcmask 1040384
    %v195 = vsel %vm194, %v169, %v193
    %v197 = vlaneseq
    %vm198 = vcmp.ge.s32.totalorder %v197, 0
    %vm199 = vcmp.lt.s32.totalorder %v197, 256
    %vm200 = vmand %vm198, %vm199
    %201 = vst.msk [vmem:[#allocation3] sm:$0x3] %vm200, %v195
    // Predicated region
    $region14: #{tpu_custom_call.1} parent=1 // pred_check
      _
    $region15: #{tpu_custom_call.1} parent=1 // pred_check_branch
      %203 = sbr.rel (0) target = $region17
    $region16: #{tpu_custom_call.1} parent=1 // pred_region
      %205 = vsyncadd [#allocation4], 0
      %s207 = sshll.u32 [#allocation3], 4
      %s208 = int_to_ptr.vmem [resolvable:$true] %s207
      %s209 = sshll.u32 %s3, 4
      %s210 = int_to_ptr.hbm [resolvable:$true] %s209
      %212 = dma.vmem_to_hbm [thread:$0]  %s208, 32, %s210, [#allocation4]
    $region17: #{tpu_custom_call.1} parent=1 // pred_fallthru
      _
    // Predicated region
    $region18: #{tpu_custom_call.1} parent=1 // pred_check
      _
    $region19: #{tpu_custom_call.1} parent=1 // pred_check_branch
      %214 = sbr.rel (0) target = $region21
    $region20: #{tpu_custom_call.1} parent=1 // pred_region
      %216 = dma.done [#allocation4], 32
    $region21: #{tpu_custom_call.1} parent=1 // pred_fallthru
      _
    %217 = vsyncpa [#allocation4], 1

</llo_original>
